<compile_context>
chip_gen: v6e
topology: v6e:2x2x1
jax: 0.10.0
libtpu: 0.0.40
codegen_flags: <defaults>
</compile_context>

<pallas_src>
import functools
import numpy as np
import jax
import jax.numpy as jnp
from jax import lax
from jax.experimental import pallas as pl
from jax.experimental.pallas import tpu as pltpu


# ----------------------------------------------------------------------------
# Call 1: variance (duration) predictor.  grid = (B,), one program per row.
# ----------------------------------------------------------------------------
def _predictor_kernel(x_ref, w1_ref, b1_ref, g1_ref, be1_ref,
                      w2_ref, b2_ref, g2_ref, be2_ref,
                      wl_ref, bl_ref,
                      logdur_ref, dur_ref, ends_ref,
                      *, T, K, pad, fuse1, fuse2):
    x = x_ref[0]                                            # (T, C) f32

    def conv_relu_ln(h_in, w_ref, b_ref, g_ref, be_ref, fuse):
        """1-D 'same' conv (+bias) -> ReLU -> LayerNorm; channels-last, bf16 MXU."""
        cin = h_in.shape[-1]
        z = jnp.zeros((pad, cin), jnp.float32)
        hp = jnp.concatenate([z, h_in, z], axis=0)          # (T + 2*pad, Cin) f32
        # Shifted taps cast straight to bf16 (any slab below is 2 B/elem).
        taps = [hp[k:k + T, :].astype(jnp.bfloat16) for k in range(K)]
        w = w_ref[...]                                      # (K*Cin, Cout) bf16
        if fuse:
            # Small Cin: fuse the K taps into a single im2col matmul so the MXU
            # sees one K*Cin-deep contraction instead of K shallow ones.
            acc = jnp.dot(jnp.concatenate(taps, axis=1), w,
                          preferred_element_type=jnp.float32)
        else:
            # Cin >= 128 already fills the MXU contraction: skip the (T, K*Cin)
            # slab and accumulate K matmuls instead (lower VMEM peak).
            acc = jnp.zeros((T, w.shape[-1]), jnp.float32)
            for k in range(K):
                acc = acc + jnp.dot(taps[k], w[k * cin:(k + 1) * cin, :],
                                    preferred_element_type=jnp.float32)
        h = jnp.maximum(acc + b_ref[...], 0.0)
        mu = jnp.mean(h, axis=-1, keepdims=True)
        var = jnp.mean((h - mu) ** 2, axis=-1, keepdims=True)
        return (h - mu) * lax.rsqrt(var + 1e-5) * g_ref[...] + be_ref[...]

    # TODO(synk): dropout after each LayerNorm is identity (eval/inference mode).
    h1 = conv_relu_ln(x, w1_ref, b1_ref, g1_ref, be1_ref, fuse1)
    h2 = conv_relu_ln(h1, w2_ref, b2_ref, g2_ref, be2_ref, fuse2)

    # Final projection kept in f32 (runs once per row; durations round/clamp on
    # it).  Lane-dense (1, T) row output, no masked column stores.
    logd = lax.dot_general(wl_ref[...], h2,
                           dimension_numbers=(((1,), (1,)), ((), ())),
                           preferred_element_type=jnp.float32) + bl_ref[...]
    logdur_ref[0] = logd

    # durations = clamp(round(exp(logd) - 1), min=0), exact int32.
    dur_i = jnp.maximum(jnp.round(jnp.exp(logd) - 1.0), 0.0).astype(jnp.int32)
    dur_ref[0] = dur_i

    # Inclusive prefix sum on the lane axis: exact int32 log-step shift-add scan
    # (no (T, T) tril matmul).  ends[t] = sum_{t' <= t} dur[t'].
    csum = dur_i
    s = 1
    while s < T:
        zrow = jnp.zeros((1, s), jnp.int32)
        csum = csum + jnp.concatenate([zrow, csum], axis=1)[:, :T]
        s *= 2
    ends_ref[0] = csum


# ----------------------------------------------------------------------------
# Call 2: length regulator.  grid = (B, ceil(M/m_tile)), both axes parallel.
# ----------------------------------------------------------------------------
def _regulator_kernel(x_ref, ends_ref, lr_ref, *, T, m_tile, use_gather):
    m0 = pl.program_id(1) * m_tile
    ends = ends_ref[0]                                      # (1, T) int32
    x2d = x_ref[0]                                          # (T, C) f32

    # Output row m copies input frame idx[m] = #(t : ends[t] <= m).  Rows past
    # the total regulated length have idx == T and stay zero (torch zero-pad).
    m_rows = lax.broadcasted_iota(jnp.int32, (m_tile, T), 0) + m0
    idx = jnp.sum((ends <= m_rows).astype(jnp.int32), axis=1, keepdims=True)
    valid = idx < T                                         # (m_tile, 1) bool

    if use_gather:
        # Row gather: one exact f32 copy per output element; no MXU work.
        gidx = jnp.broadcast_to(jnp.minimum(idx, T - 1), (m_tile, x2d.shape[-1]))
        rows = jnp.take_along_axis(x2d, gidx, axis=0, mode="promise_in_bounds")
        lr_ref[0] = jnp.where(valid, rows, 0.0)
    else:
        # Fallback (no sublane-gather lowering): one-hot matmul kept in f32 so
        # the frame copies are still exact (one-hot weights are exactly 0/1).
        t_cols = lax.broadcasted_iota(jnp.int32, (m_tile, T), 1)
        onehot = jnp.logical_and(idx == t_cols, valid).astype(jnp.float32)
        lr_ref[0] = jnp.dot(onehot, x2d, preferred_element_type=jnp.float32)


# ----------------------------------------------------------------------------
# VMEM budgeting / tiling helpers.
# ----------------------------------------------------------------------------
def _predictor_vmem_bytes(T, C, H, K):
    f32, bf16 = 4, 2
    est = (2 * T * C * f32                          # x block (double-buffered)
           + 2 * (K * C * H + K * H * H) * bf16     # conv weights (2 bufs)
           + 16 * H * f32                           # biases / LN params
           + 6 * 2 * T * f32                        # logdur/dur/ends blocks
           + (T + 2 * K) * (C + H) * f32            # padded f32 inputs
           + T * K * (C + H) * bf16                 # bf16 taps / im2col slabs
           + 6 * T * H * f32)                       # h1/h2 + LN temporaries
    return int(min(max(2 * est, 8 << 20), 48 << 20))


def _regulator_vmem_bytes(T, C, m_tile):
    est = (2 * T * C * 4              # x block (revisited across M tiles)
           + 4 * T * 4                # ends block
           + 2 * m_tile * C * 4       # lr output block (double-buffered)
           + 3 * m_tile * T * 4       # row-index iota / compare temporaries
           + 2 * m_tile * C * 4)      # gathered rows / select temp
    return int(min(max(2 * est, 8 << 20), 48 << 20))


def _pick_m_tile(M, T, C):
    """Largest M tile whose per-tile working set stays well inside v7x's 64 MiB."""
    if M <= 8:
        return M
    budget = 24 * 1024 * 1024
    for t in (2048, 1024, 512, 256, 128, 64, 32, 16, 8):
        if t > M:
            continue
        foot = 2 * T * C * 4 + 2 * t * C * 4 + 3 * t * T * 4 + 4 * T * 4
        if foot <= budget:
            return t
    return 8


# ----------------------------------------------------------------------------
# pallas_call builders.
# ----------------------------------------------------------------------------
def _fixed_spec(shape):
    return pl.BlockSpec(shape, lambda b: (0,) * len(shape))


def _predict_call(x, params, w1_2d, w2_2d, wl_row):
    B, T, C = x.shape
    K = params["w1"].shape[0]
    H = w1_2d.shape[-1]
    pad = params["padding"]
    kernel = functools.partial(_predictor_kernel, T=T, K=K, pad=pad,
                               fuse1=(C < 128), fuse2=(H < 128))
    in_specs = [
        pl.BlockSpec((1, T, C), lambda b: (b, 0, 0)),                         # x
        _fixed_spec((K * C, H)), _fixed_spec((1, H)),
        _fixed_spec((1, H)), _fixed_spec((1, H)),                             # conv1 + ln1
        _fixed_spec((K * H, H)), _fixed_spec((1, H)),
        _fixed_spec((1, H)), _fixed_spec((1, H)),                             # conv2 + ln2
        _fixed_spec((1, H)), _fixed_spec((1, 1)),                             # linear
    ]
    out_shape = (jax.ShapeDtypeStruct((B, 1, T), jnp.float32),    # log durations
                 jax.ShapeDtypeStruct((B, 1, T), jnp.int32),      # rounded durations
                 jax.ShapeDtypeStruct((B, 1, T), jnp.int32))      # inclusive prefix sum
    row_spec = pl.BlockSpec((1, 1, T), lambda b: (b, 0, 0))
    return pl.pallas_call(
        kernel,
        out_shape=out_shape,
        grid_spec=pltpu.PrefetchScalarGridSpec(
            num_scalar_prefetch=0, grid=(B,),
            in_specs=in_specs, out_specs=(row_spec, row_spec, row_spec)),
        compiler_params=pltpu.CompilerParams(
            dimension_semantics=("parallel",),
            vmem_limit_bytes=_predictor_vmem_bytes(T, C, H, K)),
    )(x, w1_2d, params["b1"], params["g1"], params["be1"],
      w2_2d, params["b2"], params["g2"], params["be2"],
      wl_row, params["bl"])


def _regulate_call(x, ends, M, m_tile, use_gather):
    B, T, C = x.shape
    n_m = pl.cdiv(M, m_tile)
    kernel = functools.partial(_regulator_kernel, T=T, m_tile=m_tile,
                               use_gather=use_gather)
    return pl.pallas_call(
        kernel,
        out_shape=jax.ShapeDtypeStruct((B, M, C), jnp.float32),
        grid_spec=pltpu.PrefetchScalarGridSpec(
            num_scalar_prefetch=0, grid=(B, n_m),
            in_specs=[pl.BlockSpec((1, T, C), lambda b, m: (b, 0, 0)),
                      pl.BlockSpec((1, 1, T), lambda b, m: (b, 0, 0))],
            out_specs=pl.BlockSpec((1, m_tile, C), lambda b, m: (b, m, 0))),
        compiler_params=pltpu.CompilerParams(
            dimension_semantics=("parallel", "parallel"),
            vmem_limit_bytes=_regulator_vmem_bytes(T, C, m_tile)),
    )(x, ends)


# Resolved lazily on first use: does this jax build lower the sublane gather?
_GATHER_SUPPORTED = None


def variance_adaptor(x, params, max_mel_length, *, m_tile=None):
    """x: (B, T, C) float32.  Returns (lr_output (B, M, C) f32,
    durations (B, T) int32, log_duration (B, T) f32)."""
    global _GATHER_SUPPORTED
    B, T, C = x.shape
    w1 = params["w1"]
    K, _, H = w1.shape
    pad = params["padding"]
    assert 2 * pad == K - 1, "conv must preserve sequence length"
    M = int(max_mel_length)
    if m_tile is None:
        m_tile = _pick_m_tile(M, T, C)

    # Host-side weight prep only (no activation copies): stack conv taps
    # ((K, Cin, Cout) -> (K*Cin, Cout)) and cast the conv MXU operands to bf16;
    # the final duration projection stays f32.
    w1_2d = w1.reshape(K * C, H).astype(jnp.bfloat16)
    w2_2d = params["w2"].reshape(K * H, H).astype(jnp.bfloat16)
    wl_row = params["wl"].reshape(1, H).astype(jnp.float32)

    logdur, dur, ends = _predict_call(x, params, w1_2d, w2_2d, wl_row)

    modes = [True, False] if _GATHER_SUPPORTED is None else [_GATHER_SUPPORTED]
    lr, err = None, None
    for use_gather in modes:
        try:
            lr = _regulate_call(x, ends, M, m_tile, use_gather)
            jax.block_until_ready(lr)
            _GATHER_SUPPORTED = use_gather
            break
        except Exception as e:     # gather lowering unavailable -> exact f32 matmul
            err, lr = e, None
    if lr is None:
        raise err

    return lr, dur.reshape(B, T), logdur.reshape(B, T)


# ----------------------------------------------------------------------------
# Parameter init and pure-JAX reference (for the smoke test).
# ----------------------------------------------------------------------------
def init_params(key, enc_emb_dim, inner_dim, kernel_size, padding):
    ks = jax.random.split(key, 4)
    return {
        "w1": 0.05 * jax.random.normal(ks[0], (kernel_size, enc_emb_dim, inner_dim), jnp.float32),
        "b1": jnp.zeros((1, inner_dim), jnp.float32),
        "g1": jnp.ones((1, inner_dim), jnp.float32),
        "be1": jnp.zeros((1, inner_dim), jnp.float32),
        "w2": 0.05 * jax.random.normal(ks[1], (kernel_size, inner_dim, inner_dim), jnp.float32),
        "b2": 0.01 * jax.random.normal(ks[2], (1, inner_dim), jnp.float32),
        "g2": jnp.ones((1, inner_dim), jnp.float32),
        "be2": jnp.zeros((1, inner_dim), jnp.float32),
        "wl": 0.1 * jax.random.normal(ks[3], (inner_dim, 1), jnp.float32),
        "bl": jnp.full((1, 1), 0.9, jnp.float32),
        "padding": padding,
    }


def _reference_logdur(x, p):
    """Pure-JAX f32 reference of the VariancePredictor."""
    pad = p["padding"]
    K = p["w1"].shape[0]
    T = x.shape[1]

    def ln(h, g, b):
        mu = jnp.mean(h, axis=-1, keepdims=True)
        var = jnp.mean((h - mu) ** 2, axis=-1, keepdims=True)
        return (h - mu) / jnp.sqrt(var + 1e-5) * g + b

    xp = jnp.pad(x, ((0, 0), (pad, pad), (0, 0)))
    h = sum(jnp.einsum("btc,ch->bth", xp[:, k:k + T, :], p["w1"][k]) for k in range(K)) + p["b1"][0]
    h = ln(jax.nn.relu(h), p["g1"][0], p["be1"][0])
    hp = jnp.pad(h, ((0, 0), (pad, pad), (0, 0)))
    h2 = sum(jnp.einsum("bth,hg->btg", hp[:, k:k + T, :], p["w2"][k]) for k in range(K)) + p["b2"][0]
    h2 = ln(jax.nn.relu(h2), p["g2"][0], p["be2"][0])
    return jnp.einsum("bth,ho->bto", h2, p["wl"])[..., 0] + p["bl"][0, 0]


if __name__ == "__main__":
    config = dict(enc_emb_dim=32, inner_dim=32, dp_kernel_size=3,
                  dp_padding=1, dropout_prob=0.1)
    B, T = 2, 8
    MAX_MEL = 16

    key = jax.random.PRNGKey(0)
    kx, kp = jax.random.split(key)
    x = jax.random.normal(kx, (B, T, config["enc_emb_dim"]), jnp.float32)
    params = init_params(kp, config["enc_emb_dim"], config["inner_dim"],
                         config["dp_kernel_size"], config["dp_padding"])

    # m_tile=8 so the small test also exercises the tiled (parallel) M axis.
    lr_out, durations, logdur = variance_adaptor(x, params, MAX_MEL, m_tile=8)
    jax.block_until_ready((lr_out, durations, logdur))

    # --- correctness smoke test ----------------------------------------------
    # Conv matmuls use bf16 MXU operands -> ~1e-2 level differences in logdur
    # vs the f32 reference; structural bugs produce O(1) errors.
    ref_logdur = np.asarray(_reference_logdur(x, params))
    assert np.allclose(np.asarray(logdur), ref_logdur, atol=1e-1), "log-duration mismatch"

    # The regulator now emits exact f32 frame copies -> tight tolerance.
    durs = np.asarray(durations)
    xn = np.asarray(x)
    ref_lr = np.zeros((B, MAX_MEL, config["enc_emb_dim"]), np.float32)
    for b in range(B):
        m = 0
        for t in range(T):
            for _ in range(int(durs[b, t])):
                if m < MAX_MEL:
                    ref_lr[b, m] = xn[b, t]
                m += 1
    assert np.allclose(np.asarray(lr_out), ref_lr, atol=1e-6), "length-regulator mismatch"

    print("KERNEL_OK")
</pallas_src>

<mosaic_0001>
module attributes {stable_mosaic.version = 11 : i64} {
  func.func @_predictor_kernel(%arg0: i32, %arg1: memref<1x8x32xf32, #tpu.memory_space<vmem>>, %arg2: memref<96x32xbf16, #tpu.memory_space<vmem>>, %arg3: memref<1x32xf32, #tpu.memory_space<vmem>>, %arg4: memref<1x32xf32, #tpu.memory_space<vmem>>, %arg5: memref<1x32xf32, #tpu.memory_space<vmem>>, %arg6: memref<96x32xbf16, #tpu.memory_space<vmem>>, %arg7: memref<1x32xf32, #tpu.memory_space<vmem>>, %arg8: memref<1x32xf32, #tpu.memory_space<vmem>>, %arg9: memref<1x32xf32, #tpu.memory_space<vmem>>, %arg10: memref<1x32xf32, #tpu.memory_space<vmem>>, %arg11: memref<1x1xf32, #tpu.memory_space<vmem>>, %arg12: memref<1x1x8xf32, #tpu.memory_space<vmem>>, %arg13: memref<1x1x8xi32, #tpu.memory_space<vmem>>, %arg14: memref<1x1x8xi32, #tpu.memory_space<vmem>>) attributes {dimension_semantics = [#tpu.dimension_semantics<parallel>], iteration_bounds = array<i64: 2>, scalar_prefetch = 0 : i64, scratch_operands = 0 : i64, tpu.core_type = #tpu.core_type<tc>, window_params = [{transform_indices = @transform_0, window_bounds = array<i64: 1, 8, 32>}, {pipeline_mode = #tpu.pipeline_mode<synchronous>, transform_indices = @transform_1, window_bounds = array<i64: 96, 32>}, {pipeline_mode = #tpu.pipeline_mode<synchronous>, transform_indices = @transform_2, window_bounds = array<i64: 1, 32>}, {pipeline_mode = #tpu.pipeline_mode<synchronous>, transform_indices = @transform_3, window_bounds = array<i64: 1, 32>}, {pipeline_mode = #tpu.pipeline_mode<synchronous>, transform_indices = @transform_4, window_bounds = array<i64: 1, 32>}, {pipeline_mode = #tpu.pipeline_mode<synchronous>, transform_indices = @transform_5, window_bounds = array<i64: 96, 32>}, {pipeline_mode = #tpu.pipeline_mode<synchronous>, transform_indices = @transform_6, window_bounds = array<i64: 1, 32>}, {pipeline_mode = #tpu.pipeline_mode<synchronous>, transform_indices = @transform_7, window_bounds = array<i64: 1, 32>}, {pipeline_mode = #tpu.pipeline_mode<synchronous>, transform_indices = @transform_8, window_bounds = array<i64: 1, 32>}, {pipeline_mode = #tpu.pipeline_mode<synchronous>, transform_indices = @transform_9, window_bounds = array<i64: 1, 32>}, {pipeline_mode = #tpu.pipeline_mode<synchronous>, transform_indices = @transform_10, window_bounds = array<i64: 1, 1>}, {transform_indices = @transform_11, window_bounds = array<i64: 1, 1, 8>}, {transform_indices = @transform_12, window_bounds = array<i64: 1, 1, 8>}, {transform_indices = @transform_13, window_bounds = array<i64: 1, 1, 8>}]} {
    %c0 = arith.constant 0 : index
    %c0_0 = arith.constant 0 : index
    %c0_1 = arith.constant 0 : index
    %0 = vector.load %arg1[%c0, %c0_0, %c0_1] : memref<1x8x32xf32, #tpu.memory_space<vmem>>, vector<1x8x32xf32>
    %1 = vector.shape_cast %0 : vector<1x8x32xf32> to vector<8x32xf32>
    %cst = arith.constant 0.000000e+00 : f32
    %2 = vector.broadcast %cst : f32 to vector<1x32xf32>
    %3 = tpu.concatenate %2, %1, %2 in 0 : vector<1x32xf32>, vector<8x32xf32>, vector<1x32xf32> -> vector<10x32xf32>
    %4 = vector.extract_strided_slice %3 {offsets = [0, 0], sizes = [8, 32], strides = [1, 1]} : vector<10x32xf32> to vector<8x32xf32>
    %5 = arith.truncf %4 : vector<8x32xf32> to vector<8x32xbf16>
    %6 = vector.extract_strided_slice %3 {offsets = [1, 0], sizes = [8, 32], strides = [1, 1]} : vector<10x32xf32> to vector<8x32xf32>
    %7 = arith.truncf %6 : vector<8x32xf32> to vector<8x32xbf16>
    %8 = vector.extract_strided_slice %3 {offsets = [2, 0], sizes = [8, 32], strides = [1, 1]} : vector<10x32xf32> to vector<8x32xf32>
    %9 = arith.truncf %8 : vector<8x32xf32> to vector<8x32xbf16>
    %c0_2 = arith.constant 0 : index
    %c0_3 = arith.constant 0 : index
    %10 = vector.load %arg2[%c0_2, %c0_3] : memref<96x32xbf16, #tpu.memory_space<vmem>>, vector<96x32xbf16>
    %11 = tpu.concatenate %5, %7, %9 in 1 : vector<8x32xbf16>, vector<8x32xbf16>, vector<8x32xbf16> -> vector<8x96xbf16>
    %cst_4 = arith.constant dense<0.000000e+00> : vector<8x32xf32>
    %12 = tpu.matmul %11, %10, %cst_4 {dimension_numbers = #tpu.dot_dimension_numbers<[1], [0], [0], [1], [0, 0, 1, 1], [], []>} : vector<8x96xbf16>, vector<96x32xbf16>, vector<8x32xf32> -> vector<8x32xf32>
    %c0_5 = arith.constant 0 : index
    %c0_6 = arith.constant 0 : index
    %13 = vector.load %arg3[%c0_5, %c0_6] : memref<1x32xf32, #tpu.memory_space<vmem>>, vector<1x32xf32>
    %14 = vector.broadcast %13 : vector<1x32xf32> to vector<8x32xf32>
    %15 = arith.addf %12, %14 : vector<8x32xf32>
    %cst_7 = arith.constant 0.000000e+00 : f32
    %16 = vector.broadcast %cst_7 : f32 to vector<8x32xf32>
    %17 = arith.maximumf %15, %16 : vector<8x32xf32>
    %cst_8 = arith.constant dense<0.000000e+00> : vector<8xf32>
    %18 = vector.multi_reduction <add>, %17, %cst_8 [1] : vector<8x32xf32> to vector<8xf32>
    %19 = vector.shape_cast %18 : vector<8xf32> to vector<8x1xf32>
    %cst_9 = arith.constant 3.200000e+01 : f32
    %20 = vector.broadcast %cst_9 : f32 to vector<8x1xf32>
    %21 = arith.divf %19, %20 : vector<8x1xf32>
    %22 = vector.broadcast %21 : vector<8x1xf32> to vector<8x32xf32>
    %23 = arith.subf %17, %22 : vector<8x32xf32>
    %24 = arith.mulf %23, %23 : vector<8x32xf32>
    %cst_10 = arith.constant dense<0.000000e+00> : vector<8xf32>
    %25 = vector.multi_reduction <add>, %24, %cst_10 [1] : vector<8x32xf32> to vector<8xf32>
    %26 = vector.shape_cast %25 : vector<8xf32> to vector<8x1xf32>
    %cst_11 = arith.constant 3.200000e+01 : f32
    %27 = vector.broadcast %cst_11 : f32 to vector<8x1xf32>
    %28 = arith.divf %26, %27 : vector<8x1xf32>
    %29 = vector.broadcast %21 : vector<8x1xf32> to vector<8x32xf32>
    %30 = arith.subf %17, %29 : vector<8x32xf32>
    %cst_12 = arith.constant 9.99999974E-6 : f32
    %31 = vector.broadcast %cst_12 : f32 to vector<8x1xf32>
    %32 = arith.addf %28, %31 : vector<8x1xf32>
    %33 = math.rsqrt %32 : vector<8x1xf32>
    %34 = vector.broadcast %33 : vector<8x1xf32> to vector<8x32xf32>
    %35 = arith.mulf %30, %34 : vector<8x32xf32>
    %c0_13 = arith.constant 0 : index
    %c0_14 = arith.constant 0 : index
    %36 = vector.load %arg4[%c0_13, %c0_14] : memref<1x32xf32, #tpu.memory_space<vmem>>, vector<1x32xf32>
    %37 = vector.broadcast %36 : vector<1x32xf32> to vector<8x32xf32>
    %38 = arith.mulf %35, %37 : vector<8x32xf32>
    %c0_15 = arith.constant 0 : index
    %c0_16 = arith.constant 0 : index
    %39 = vector.load %arg5[%c0_15, %c0_16] : memref<1x32xf32, #tpu.memory_space<vmem>>, vector<1x32xf32>
    %40 = vector.broadcast %39 : vector<1x32xf32> to vector<8x32xf32>
    %41 = arith.addf %38, %40 : vector<8x32xf32>
    %cst_17 = arith.constant 0.000000e+00 : f32
    %42 = vector.broadcast %cst_17 : f32 to vector<1x32xf32>
    %43 = tpu.concatenate %42, %41, %42 in 0 : vector<1x32xf32>, vector<8x32xf32>, vector<1x32xf32> -> vector<10x32xf32>
    %44 = vector.extract_strided_slice %43 {offsets = [0, 0], sizes = [8, 32], strides = [1, 1]} : vector<10x32xf32> to vector<8x32xf32>
    %45 = arith.truncf %44 : vector<8x32xf32> to vector<8x32xbf16>
    %46 = vector.extract_strided_slice %43 {offsets = [1, 0], sizes = [8, 32], strides = [1, 1]} : vector<10x32xf32> to vector<8x32xf32>
    %47 = arith.truncf %46 : vector<8x32xf32> to vector<8x32xbf16>
    %48 = vector.extract_strided_slice %43 {offsets = [2, 0], sizes = [8, 32], strides = [1, 1]} : vector<10x32xf32> to vector<8x32xf32>
    %49 = arith.truncf %48 : vector<8x32xf32> to vector<8x32xbf16>
    %c0_18 = arith.constant 0 : index
    %c0_19 = arith.constant 0 : index
    %50 = vector.load %arg6[%c0_18, %c0_19] : memref<96x32xbf16, #tpu.memory_space<vmem>>, vector<96x32xbf16>
    %51 = tpu.concatenate %45, %47, %49 in 1 : vector<8x32xbf16>, vector<8x32xbf16>, vector<8x32xbf16> -> vector<8x96xbf16>
    %cst_20 = arith.constant dense<0.000000e+00> : vector<8x32xf32>
    %52 = tpu.matmul %51, %50, %cst_20 {dimension_numbers = #tpu.dot_dimension_numbers<[1], [0], [0], [1], [0, 0, 1, 1], [], []>} : vector<8x96xbf16>, vector<96x32xbf16>, vector<8x32xf32> -> vector<8x32xf32>
    %c0_21 = arith.constant 0 : index
    %c0_22 = arith.constant 0 : index
    %53 = vector.load %arg7[%c0_21, %c0_22] : memref<1x32xf32, #tpu.memory_space<vmem>>, vector<1x32xf32>
    %54 = vector.broadcast %53 : vector<1x32xf32> to vector<8x32xf32>
    %55 = arith.addf %52, %54 : vector<8x32xf32>
    %cst_23 = arith.constant 0.000000e+00 : f32
    %56 = vector.broadcast %cst_23 : f32 to vector<8x32xf32>
    %57 = arith.maximumf %55, %56 : vector<8x32xf32>
    %cst_24 = arith.constant dense<0.000000e+00> : vector<8xf32>
    %58 = vector.multi_reduction <add>, %57, %cst_24 [1] : vector<8x32xf32> to vector<8xf32>
    %59 = vector.shape_cast %58 : vector<8xf32> to vector<8x1xf32>
    %cst_25 = arith.constant 3.200000e+01 : f32
    %60 = vector.broadcast %cst_25 : f32 to vector<8x1xf32>
    %61 = arith.divf %59, %60 : vector<8x1xf32>
    %62 = vector.broadcast %61 : vector<8x1xf32> to vector<8x32xf32>
    %63 = arith.subf %57, %62 : vector<8x32xf32>
    %64 = arith.mulf %63, %63 : vector<8x32xf32>
    %cst_26 = arith.constant dense<0.000000e+00> : vector<8xf32>
    %65 = vector.multi_reduction <add>, %64, %cst_26 [1] : vector<8x32xf32> to vector<8xf32>
    %66 = vector.shape_cast %65 : vector<8xf32> to vector<8x1xf32>
    %cst_27 = arith.constant 3.200000e+01 : f32
    %67 = vector.broadcast %cst_27 : f32 to vector<8x1xf32>
    %68 = arith.divf %66, %67 : vector<8x1xf32>
    %69 = vector.broadcast %61 : vector<8x1xf32> to vector<8x32xf32>
    %70 = arith.subf %57, %69 : vector<8x32xf32>
    %cst_28 = arith.constant 9.99999974E-6 : f32
    %71 = vector.broadcast %cst_28 : f32 to vector<8x1xf32>
    %72 = arith.addf %68, %71 : vector<8x1xf32>
    %73 = math.rsqrt %72 : vector<8x1xf32>
    %74 = vector.broadcast %73 : vector<8x1xf32> to vector<8x32xf32>
    %75 = arith.mulf %70, %74 : vector<8x32xf32>
    %c0_29 = arith.constant 0 : index
    %c0_30 = arith.constant 0 : index
    %76 = vector.load %arg8[%c0_29, %c0_30] : memref<1x32xf32, #tpu.memory_space<vmem>>, vector<1x32xf32>
    %77 = vector.broadcast %76 : vector<1x32xf32> to vector<8x32xf32>
    %78 = arith.mulf %75, %77 : vector<8x32xf32>
    %c0_31 = arith.constant 0 : index
    %c0_32 = arith.constant 0 : index
    %79 = vector.load %arg9[%c0_31, %c0_32] : memref<1x32xf32, #tpu.memory_space<vmem>>, vector<1x32xf32>
    %80 = vector.broadcast %79 : vector<1x32xf32> to vector<8x32xf32>
    %81 = arith.addf %78, %80 : vector<8x32xf32>
    %c0_33 = arith.constant 0 : index
    %c0_34 = arith.constant 0 : index
    %82 = vector.load %arg10[%c0_33, %c0_34] : memref<1x32xf32, #tpu.memory_space<vmem>>, vector<1x32xf32>
    %cst_35 = arith.constant dense<0.000000e+00> : vector<1x8xf32>
    %83 = tpu.matmul %82, %81, %cst_35 {dimension_numbers = #tpu.dot_dimension_numbers<[1], [1], [0], [0], [0, 0, 1, 0], [], []>} : vector<1x32xf32>, vector<8x32xf32>, vector<1x8xf32> -> vector<1x8xf32>
    %c0_36 = arith.constant 0 : index
    %c0_37 = arith.constant 0 : index
    %84 = vector.load %arg11[%c0_36, %c0_37] : memref<1x1xf32, #tpu.memory_space<vmem>>, vector<1x1xf32>
    %85 = vector.broadcast %84 : vector<1x1xf32> to vector<1x8xf32>
    %86 = arith.addf %83, %85 : vector<1x8xf32>
    %c0_38 = arith.constant 0 : index
    %c0_39 = arith.constant 0 : index
    %c0_40 = arith.constant 0 : index
    %87 = vector.load %arg12[%c0_38, %c0_39, %c0_40] : memref<1x1x8xf32, #tpu.memory_space<vmem>>, vector<1x1x8xf32>
    %88 = vector.shape_cast %87 : vector<1x1x8xf32> to vector<1x8xf32>
    %89 = vector.shape_cast %86 : vector<1x8xf32> to vector<1x1x8xf32>
    tpu.vector_store %arg12[%c0_38, %c0_39, %c0_40], %89 {strides = array<i32>} : memref<1x1x8xf32, #tpu.memory_space<vmem>>, vector<1x1x8xf32>,
    %90 = math.exp %86 : vector<1x8xf32>
    %cst_41 = arith.constant 1.000000e+00 : f32
    %91 = vector.broadcast %cst_41 : f32 to vector<1x8xf32>
    %92 = arith.subf %90, %91 : vector<1x8xf32>
    %93 = math.roundeven %92 : vector<1x8xf32>
    %cst_42 = arith.constant 0.000000e+00 : f32
    %94 = vector.broadcast %cst_42 : f32 to vector<1x8xf32>
    %95 = arith.maximumf %93, %94 : vector<1x8xf32>
    %96 = arith.fptosi %95 : vector<1x8xf32> to vector<1x8xi32>
    %c0_43 = arith.constant 0 : index
    %c0_44 = arith.constant 0 : index
    %c0_45 = arith.constant 0 : index
    %97 = vector.load %arg13[%c0_43, %c0_44, %c0_45] : memref<1x1x8xi32, #tpu.memory_space<vmem>>, vector<1x1x8xi32>
    %98 = vector.shape_cast %97 : vector<1x1x8xi32> to vector<1x8xi32>
    %99 = vector.shape_cast %96 : vector<1x8xi32> to vector<1x1x8xi32>
    tpu.vector_store %arg13[%c0_43, %c0_44, %c0_45], %99 {strides = array<i32>} : memref<1x1x8xi32, #tpu.memory_space<vmem>>, vector<1x1x8xi32>,
    %c0_i32 = arith.constant 0 : i32
    %100 = vector.broadcast %c0_i32 : i32 to vector<1x1xi32>
    %101 = tpu.concatenate %100, %96 in 1 : vector<1x1xi32>, vector<1x8xi32> -> vector<1x9xi32>
    %102 = vector.extract_strided_slice %101 {offsets = [0, 0], sizes = [1, 8], strides = [1, 1]} : vector<1x9xi32> to vector<1x8xi32>
    %103 = arith.addi %96, %102 : vector<1x8xi32>
    %c0_i32_46 = arith.constant 0 : i32
    %104 = vector.broadcast %c0_i32_46 : i32 to vector<1x2xi32>
    %105 = tpu.concatenate %104, %103 in 1 : vector<1x2xi32>, vector<1x8xi32> -> vector<1x10xi32>
    %106 = vector.extract_strided_slice %105 {offsets = [0, 0], sizes = [1, 8], strides = [1, 1]} : vector<1x10xi32> to vector<1x8xi32>
    %107 = arith.addi %103, %106 : vector<1x8xi32>
    %c0_i32_47 = arith.constant 0 : i32
    %108 = vector.broadcast %c0_i32_47 : i32 to vector<1x4xi32>
    %109 = tpu.concatenate %108, %107 in 1 : vector<1x4xi32>, vector<1x8xi32> -> vector<1x12xi32>
    %110 = vector.extract_strided_slice %109 {offsets = [0, 0], sizes = [1, 8], strides = [1, 1]} : vector<1x12xi32> to vector<1x8xi32>
    %111 = arith.addi %107, %110 : vector<1x8xi32>
    %c0_48 = arith.constant 0 : index
    %c0_49 = arith.constant 0 : index
    %c0_50 = arith.constant 0 : index
    %112 = vector.load %arg14[%c0_48, %c0_49, %c0_50] : memref<1x1x8xi32, #tpu.memory_space<vmem>>, vector<1x1x8xi32>
    %113 = vector.shape_cast %112 : vector<1x1x8xi32> to vector<1x8xi32>
    %114 = vector.shape_cast %111 : vector<1x8xi32> to vector<1x1x8xi32>
    tpu.vector_store %arg14[%c0_48, %c0_49, %c0_50], %114 {strides = array<i32>} : memref<1x1x8xi32, #tpu.memory_space<vmem>>, vector<1x1x8xi32>,
    return
  }
  func.func @transform_0(%arg0: i32) -> (i32, i32, i32) {
    %c0_i32 = arith.constant 0 : i32
    %c0_i32_0 = arith.constant 0 : i32
    %c0_i32_1 = arith.constant 0 : i32
    return %arg0, %c0_i32, %c0_i32_0 : i32, i32, i32
  }
  func.func @transform_1(%arg0: i32) -> (i32, i32) {
    %c0_i32 = arith.constant 0 : i32
    %c0_i32_0 = arith.constant 0 : i32
    %c0_i32_1 = arith.constant 0 : i32
    return %c0_i32, %c0_i32_0 : i32, i32
  }
  func.func @transform_2(%arg0: i32) -> (i32, i32) {
    %c0_i32 = arith.constant 0 : i32
    %c0_i32_0 = arith.constant 0 : i32
    %c0_i32_1 = arith.constant 0 : i32
    return %c0_i32, %c0_i32_0 : i32, i32
  }
  func.func @transform_3(%arg0: i32) -> (i32, i32) {
    %c0_i32 = arith.constant 0 : i32
    %c0_i32_0 = arith.constant 0 : i32
    %c0_i32_1 = arith.constant 0 : i32
    return %c0_i32, %c0_i32_0 : i32, i32
  }
  func.func @transform_4(%arg0: i32) -> (i32, i32) {
    %c0_i32 = arith.constant 0 : i32
    %c0_i32_0 = arith.constant 0 : i32
    %c0_i32_1 = arith.constant 0 : i32
    return %c0_i32, %c0_i32_0 : i32, i32
  }
  func.func @transform_5(%arg0: i32) -> (i32, i32) {
    %c0_i32 = arith.constant 0 : i32
    %c0_i32_0 = arith.constant 0 : i32
    %c0_i32_1 = arith.constant 0 : i32
    return %c0_i32, %c0_i32_0 : i32, i32
  }
  func.func @transform_6(%arg0: i32) -> (i32, i32) {
    %c0_i32 = arith.constant 0 : i32
    %c0_i32_0 = arith.constant 0 : i32
    %c0_i32_1 = arith.constant 0 : i32
    return %c0_i32, %c0_i32_0 : i32, i32
  }
  func.func @transform_7(%arg0: i32) -> (i32, i32) {
    %c0_i32 = arith.constant 0 : i32
    %c0_i32_0 = arith.constant 0 : i32
    %c0_i32_1 = arith.constant 0 : i32
    return %c0_i32, %c0_i32_0 : i32, i32
  }
  func.func @transform_8(%arg0: i32) -> (i32, i32) {
    %c0_i32 = arith.constant 0 : i32
    %c0_i32_0 = arith.constant 0 : i32
    %c0_i32_1 = arith.constant 0 : i32
    return %c0_i32, %c0_i32_0 : i32, i32
  }
  func.func @transform_9(%arg0: i32) -> (i32, i32) {
    %c0_i32 = arith.constant 0 : i32
    %c0_i32_0 = arith.constant 0 : i32
    %c0_i32_1 = arith.constant 0 : i32
    return %c0_i32, %c0_i32_0 : i32, i32
  }
  func.func @transform_10(%arg0: i32) -> (i32, i32) {
    %c0_i32 = arith.constant 0 : i32
    %c0_i32_0 = arith.constant 0 : i32
    %c0_i32_1 = arith.constant 0 : i32
    return %c0_i32, %c0_i32_0 : i32, i32
  }
  func.func @transform_11(%arg0: i32) -> (i32, i32, i32) {
    %c0_i32 = arith.constant 0 : i32
    %c0_i32_0 = arith.constant 0 : i32
    %c0_i32_1 = arith.constant 0 : i32
    return %arg0, %c0_i32, %c0_i32_0 : i32, i32, i32
  }
  func.func @transform_12(%arg0: i32) -> (i32, i32, i32) {
    %c0_i32 = arith.constant 0 : i32
    %c0_i32_0 = arith.constant 0 : i32
    %c0_i32_1 = arith.constant 0 : i32
    return %arg0, %c0_i32, %c0_i32_0 : i32, i32, i32
  }
  func.func @transform_13(%arg0: i32) -> (i32, i32, i32) {
    %c0_i32 = arith.constant 0 : i32
    %c0_i32_0 = arith.constant 0 : i32
    %c0_i32_1 = arith.constant 0 : i32
    return %arg0, %c0_i32, %c0_i32_0 : i32, i32, i32
  }
}

</mosaic_0001>

<llo_original>
// kernel: tpu_custom_call.1
$region0: #{tpu_custom_call.1}
  #allocation0 [shape = 'u32[]', space=smem, size = 0x4, offset = 0x4, fixed_abs, tag = 'smem constant byte address 0x4 - core index']
  #allocation1 [shape = 'u32[144,128]{1,0:T(1,128)}', space=vmem, size = 0x12000, scoped, tag = 'internal scratch']
  #allocation2 [shape = 'f32[1,1]{1,0:T(1,128)S(1)}', space=vmem, size = 0x200, scoped, tag = 'scoped memory for tpu_custom_call.1']
  %s0 = inlined_call_operand.vmem [shape: f32[2,8,32], index: 0, kind: input, shape index: {}]
  %s1 = inlined_call_operand.vmem [shape: bf16[96,32], index: 1, kind: input, shape index: {}]
  %s2 = inlined_call_operand.vmem [shape: f32[1,32], index: 2, kind: input, shape index: {}]
  %s3 = inlined_call_operand.vmem [shape: f32[1,32], index: 3, kind: input, shape index: {}]
  %s4 = inlined_call_operand.vmem [shape: f32[1,32], index: 4, kind: input, shape index: {}]
  %s5 = inlined_call_operand.vmem [shape: bf16[96,32], index: 5, kind: input, shape index: {}]
  %s6 = inlined_call_operand.vmem [shape: f32[1,32], index: 6, kind: input, shape index: {}]
  %s7 = inlined_call_operand.vmem [shape: f32[1,32], index: 7, kind: input, shape index: {}]
  %s8 = inlined_call_operand.vmem [shape: f32[1,32], index: 8, kind: input, shape index: {}]
  %s9 = inlined_call_operand.vmem [shape: f32[1,32], index: 9, kind: input, shape index: {}]
  %s10 = inlined_call_operand.<no memory space> [shape: f32[1,1], index: 10, kind: input, shape index: {}]
  %s11 = inlined_call_operand.hbm [shape: f32[2,1,8], index: 11, kind: output, shape index: {0}]
  %s12 = inlined_call_operand.hbm [shape: s32[2,1,8], index: 12, kind: output, shape index: {1}]
  %s13 = inlined_call_operand.hbm [shape: s32[2,1,8], index: 13, kind: output, shape index: {2}]
  %14 = xla_tuple %s11, %s12, %s13
  %s15 = sld [smem:[#allocation0]]
  $region93: #{tpu_custom_call.1} parent=0
    _
  %s17 = ssub.s32 1, %s15
  %s18 = scalar_select 0, %s17, %s15
  %v19 = vstv %s10
  %20 = vst [vmem:[#allocation2] sm:$0x1] %v19
  $region1: #{tpu_custom_call.1} parent=0
    #allocation3 [shape = 'u8[1024]{0}', space=vmem, size = 0x400, scoped, tag = 'output window, operand 0']
    #allocation4 [shape = 's32[2]{0}', space=sflag, size = 0x8, scoped, tag = 'scoped memory for tpu_custom_call.1']
    #allocation5 [shape = 'u8[1024]{0}', space=vmem, size = 0x400, scoped, tag = 'output window, operand 1']
    #allocation6 [shape = 's32[2]{0}', space=sflag, size = 0x8, scoped, tag = 'scoped memory for tpu_custom_call.1']
    #allocation7 [shape = 'u8[1024]{0}', space=vmem, size = 0x400, scoped, tag = 'output window, operand 2']
    %21 = vsyncpa [#allocation4], 0
    %s22 = scalar_lea.sflag [#allocation4], 1
    %23 = vsyncpa %s22, 0
    %24 = vsyncpa [#allocation6], 0
    %s25 = scalar_lea.sflag [#allocation6], 1
    %26 = vsyncpa %s25, 0
    loop: start=0, step=1, limit=4
    $region2: #{tpu_custom_call.1} parent=1 // loop_pre_header
      _
    $region3: #{tpu_custom_call.1} parent=1 // loop_header
      %s28 = sphi 0, %s32
      %p29 = scmp.ge.s32.totalorder %s28, 4
      %s38 = sphi 0, %s40
      %s41 = sphi 0, %s38
      %s42 = sphi 0, %s41
      %s58 = sphi 0, %s42
      %s62 = sphi 0, %s62
      %s64 = sphi 0, %s62
      %s65 = sphi 0, %s64
      %s79 = sphi 0, %s65
      %s83 = sphi 0, %s83
      %s85 = sphi 0, %s83
      %s86 = sphi 0, %s85
      %s100 = sphi 0, %s86
      %s104 = sphi 0, %s104
      %s106 = sphi 0, %s104
      %s107 = sphi 0, %s106
      %s121 = sphi 0, %s107
      %s125 = sphi 0, %s125
      %s127 = sphi 0, %s125
      %s128 = sphi 0, %s127
      %s142 = sphi 0, %s128
      %s146 = sphi 0, %s146
      %s148 = sphi 0, %s146
      %s149 = sphi 0, %s148
      %s163 = sphi 0, %s149
      %s167 = sphi 0, %s167
      %s169 = sphi 0, %s167
      %s170 = sphi 0, %s169
      %s184 = sphi 0, %s170
      %s188 = sphi 0, %s188
      %s190 = sphi 0, %s188
      %s191 = sphi 0, %s190
      %s205 = sphi 0, %s191
      %s209 = sphi 0, %s209
      %s211 = sphi 0, %s209
      %s212 = sphi 0, %s211
      %s226 = sphi 0, %s212
      %s230 = sphi 0, %s230
      %s232 = sphi 0, %s230
      %s233 = sphi 0, %s232
      %s247 = sphi 0, %s233
      %s251 = sphi 0, %s251
      %s253 = sphi 0, %s251
      %s254 = sphi 0, %s253
      %s268 = sphi 0, %s254
      %s274 = sphi 0, %s276
      %s277 = sphi 0, %s274
      %s278 = sphi 0, %s277
      %s294 = sphi 0, %s278
      %s300 = sphi 0, %s302
      %s303 = sphi 0, %s300
      %s304 = sphi 0, %s303
      %s320 = sphi 0, %s304
      %s326 = sphi 0, %s328
      %s329 = sphi 0, %s326
      %s330 = sphi 0, %s329
      %s346 = sphi 0, %s330
    $region4: #{tpu_custom_call.1} parent=1 // loop_header_branch
      %31 = sbr.rel (%p29) target = $region8
    $region5: #{tpu_custom_call.1} parent=1 // loop_body
      %s33 = ssub.s32 %s28, 1
      %s34 = ssub.s32 %s28, 2
      %s35 = sadd.s32 %s28, 1
      %s36 = ssub.s32 %s28, %s35
      %p37 = scmp.eq.s32.totalorder %s36, 0
      %s39 = sadd.s32 %s38, 1
      %s40 = scalar_select %p37, %s38, %s39
      %p43 = pneg %p37
      %p44 = scmp.eq.s32.totalorder %s28, 1
      %p45 = por %p43, %p44
      %p46 = scmp.ne.s32.totalorder %s38, %s41
      %p47 = scmp.eq.s32.totalorder %s28, 0
      %p48 = por %p46, %p47
      %p49 = scmp.ne.s32.totalorder %s38, %s41
      %p50 = scmp.eq.s32.totalorder %s33, 1
      %p51 = por %p49, %p50
      %p52 = scmp.ne.s32.totalorder %s41, %s42
      %p53 = scmp.eq.s32.totalorder %s33, 0
      %p54 = por %p52, %p53
      %p55 = scmp.ne.s32.totalorder %s41, %s42
      %p56 = scmp.eq.s32.totalorder %s34, 1
      %p57 = por %p55, %p56
      %p59 = scmp.ne.s32.totalorder %s42, %s58
      %p60 = scmp.eq.s32.totalorder %s34, 0
      %p61 = por %p59, %p60
      %s63 = sadd.s32 %s62, 1
      %p66 = scmp.eq.s32.totalorder %s28, 1
      %p67 = scmp.ne.s32.totalorder %s62, %s64
      %p68 = scmp.eq.s32.totalorder %s28, 0
      %p69 = por %p67, %p68
      %p70 = scmp.ne.s32.totalorder %s62, %s64
      %p71 = scmp.eq.s32.totalorder %s33, 1
      %p72 = por %p70, %p71
      %p73 = scmp.ne.s32.totalorder %s64, %s65
      %p74 = scmp.eq.s32.totalorder %s33, 0
      %p75 = por %p73, %p74
      %p76 = scmp.ne.s32.totalorder %s64, %s65
      %p77 = scmp.eq.s32.totalorder %s34, 1
      %p78 = por %p76, %p77
      %p80 = scmp.ne.s32.totalorder %s65, %s79
      %p81 = scmp.eq.s32.totalorder %s34, 0
      %p82 = por %p80, %p81
      %s84 = sadd.s32 %s83, 1
      %p87 = scmp.eq.s32.totalorder %s28, 1
      %p88 = scmp.ne.s32.totalorder %s83, %s85
      %p89 = scmp.eq.s32.totalorder %s28, 0
      %p90 = por %p88, %p89
      %p91 = scmp.ne.s32.totalorder %s83, %s85
      %p92 = scmp.eq.s32.totalorder %s33, 1
      %p93 = por %p91, %p92
      %p94 = scmp.ne.s32.totalorder %s85, %s86
      %p95 = scmp.eq.s32.totalorder %s33, 0
      %p96 = por %p94, %p95
      %p97 = scmp.ne.s32.totalorder %s85, %s86
      %p98 = scmp.eq.s32.totalorder %s34, 1
      %p99 = por %p97, %p98
      %p101 = scmp.ne.s32.totalorder %s86, %s100
      %p102 = scmp.eq.s32.totalorder %s34, 0
      %p103 = por %p101, %p102
      %s105 = sadd.s32 %s104, 1
      %p108 = scmp.eq.s32.totalorder %s28, 1
      %p109 = scmp.ne.s32.totalorder %s104, %s106
      %p110 = scmp.eq.s32.totalorder %s28, 0
      %p111 = por %p109, %p110
      %p112 = scmp.ne.s32.totalorder %s104, %s106
      %p113 = scmp.eq.s32.totalorder %s33, 1
      %p114 = por %p112, %p113
      %p115 = scmp.ne.s32.totalorder %s106, %s107
      %p116 = scmp.eq.s32.totalorder %s33, 0
      %p117 = por %p115, %p116
      %p118 = scmp.ne.s32.totalorder %s106, %s107
      %p119 = scmp.eq.s32.totalorder %s34, 1
      %p120 = por %p118, %p119
      %p122 = scmp.ne.s32.totalorder %s107, %s121
      %p123 = scmp.eq.s32.totalorder %s34, 0
      %p124 = por %p122, %p123
      %s126 = sadd.s32 %s125, 1
      %p129 = scmp.eq.s32.totalorder %s28, 1
      %p130 = scmp.ne.s32.totalorder %s125, %s127
      %p131 = scmp.eq.s32.totalorder %s28, 0
      %p132 = por %p130, %p131
      %p133 = scmp.ne.s32.totalorder %s125, %s127
      %p134 = scmp.eq.s32.totalorder %s33, 1
      %p135 = por %p133, %p134
      %p136 = scmp.ne.s32.totalorder %s127, %s128
      %p137 = scmp.eq.s32.totalorder %s33, 0
      %p138 = por %p136, %p137
      %p139 = scmp.ne.s32.totalorder %s127, %s128
      %p140 = scmp.eq.s32.totalorder %s34, 1
      %p141 = por %p139, %p140
      %p143 = scmp.ne.s32.totalorder %s128, %s142
      %p144 = scmp.eq.s32.totalorder %s34, 0
      %p145 = por %p143, %p144
      %s147 = sadd.s32 %s146, 1
      %p150 = scmp.eq.s32.totalorder %s28, 1
      %p151 = scmp.ne.s32.totalorder %s146, %s148
      %p152 = scmp.eq.s32.totalorder %s28, 0
      %p153 = por %p151, %p152
      %p154 = scmp.ne.s32.totalorder %s146, %s148
      %p155 = scmp.eq.s32.totalorder %s33, 1
      %p156 = por %p154, %p155
      %p157 = scmp.ne.s32.totalorder %s148, %s149
      %p158 = scmp.eq.s32.totalorder %s33, 0
      %p159 = por %p157, %p158
      %p160 = scmp.ne.s32.totalorder %s148, %s149
      %p161 = scmp.eq.s32.totalorder %s34, 1
      %p162 = por %p160, %p161
      %p164 = scmp.ne.s32.totalorder %s149, %s163
      %p165 = scmp.eq.s32.totalorder %s34, 0
      %p166 = por %p164, %p165
      %s168 = sadd.s32 %s167, 1
      %p171 = scmp.eq.s32.totalorder %s28, 1
      %p172 = scmp.ne.s32.totalorder %s167, %s169
      %p173 = scmp.eq.s32.totalorder %s28, 0
      %p174 = por %p172, %p173
      %p175 = scmp.ne.s32.totalorder %s167, %s169
      %p176 = scmp.eq.s32.totalorder %s33, 1
      %p177 = por %p175, %p176
      %p178 = scmp.ne.s32.totalorder %s169, %s170
      %p179 = scmp.eq.s32.totalorder %s33, 0
      %p180 = por %p178, %p179
      %p181 = scmp.ne.s32.totalorder %s169, %s170
      %p182 = scmp.eq.s32.totalorder %s34, 1
      %p183 = por %p181, %p182
      %p185 = scmp.ne.s32.totalorder %s170, %s184
      %p186 = scmp.eq.s32.totalorder %s34, 0
      %p187 = por %p185, %p186
      %s189 = sadd.s32 %s188, 1
      %p192 = scmp.eq.s32.totalorder %s28, 1
      %p193 = scmp.ne.s32.totalorder %s188, %s190
      %p194 = scmp.eq.s32.totalorder %s28, 0
      %p195 = por %p193, %p194
      %p196 = scmp.ne.s32.totalorder %s188, %s190
      %p197 = scmp.eq.s32.totalorder %s33, 1
      %p198 = por %p196, %p197
      %p199 = scmp.ne.s32.totalorder %s190, %s191
      %p200 = scmp.eq.s32.totalorder %s33, 0
      %p201 = por %p199, %p200
      %p202 = scmp.ne.s32.totalorder %s190, %s191
      %p203 = scmp.eq.s32.totalorder %s34, 1
      %p204 = por %p202, %p203
      %p206 = scmp.ne.s32.totalorder %s191, %s205
      %p207 = scmp.eq.s32.totalorder %s34, 0
      %p208 = por %p206, %p207
      %s210 = sadd.s32 %s209, 1
      %p213 = scmp.eq.s32.totalorder %s28, 1
      %p214 = scmp.ne.s32.totalorder %s209, %s211
      %p215 = scmp.eq.s32.totalorder %s28, 0
      %p216 = por %p214, %p215
      %p217 = scmp.ne.s32.totalorder %s209, %s211
      %p218 = scmp.eq.s32.totalorder %s33, 1
      %p219 = por %p217, %p218
      %p220 = scmp.ne.s32.totalorder %s211, %s212
      %p221 = scmp.eq.s32.totalorder %s33, 0
      %p222 = por %p220, %p221
      %p223 = scmp.ne.s32.totalorder %s211, %s212
      %p224 = scmp.eq.s32.totalorder %s34, 1
      %p225 = por %p223, %p224
      %p227 = scmp.ne.s32.totalorder %s212, %s226
      %p228 = scmp.eq.s32.totalorder %s34, 0
      %p229 = por %p227, %p228
      %s231 = sadd.s32 %s230, 1
      %p234 = scmp.eq.s32.totalorder %s28, 1
      %p235 = scmp.ne.s32.totalorder %s230, %s232
      %p236 = scmp.eq.s32.totalorder %s28, 0
      %p237 = por %p235, %p236
      %p238 = scmp.ne.s32.totalorder %s230, %s232
      %p239 = scmp.eq.s32.totalorder %s33, 1
      %p240 = por %p238, %p239
      %p241 = scmp.ne.s32.totalorder %s232, %s233
      %p242 = scmp.eq.s32.totalorder %s33, 0
      %p243 = por %p241, %p242
      %p244 = scmp.ne.s32.totalorder %s232, %s233
      %p245 = scmp.eq.s32.totalorder %s34, 1
      %p246 = por %p244, %p245
      %p248 = scmp.ne.s32.totalorder %s233, %s247
      %p249 = scmp.eq.s32.totalorder %s34, 0
      %p250 = por %p248, %p249
      %s252 = sadd.s32 %s251, 1
      %p255 = scmp.eq.s32.totalorder %s28, 1
      %p256 = scmp.ne.s32.totalorder %s251, %s253
      %p257 = scmp.eq.s32.totalorder %s28, 0
      %p258 = por %p256, %p257
      %p259 = scmp.ne.s32.totalorder %s251, %s253
      %p260 = scmp.eq.s32.totalorder %s33, 1
      %p261 = por %p259, %p260
      %p262 = scmp.ne.s32.totalorder %s253, %s254
      %p263 = scmp.eq.s32.totalorder %s33, 0
      %p264 = por %p262, %p263
      %p265 = scmp.ne.s32.totalorder %s253, %s254
      %p266 = scmp.eq.s32.totalorder %s34, 1
      %p267 = por %p265, %p266
      %p269 = scmp.ne.s32.totalorder %s254, %s268
      %p270 = scmp.eq.s32.totalorder %s34, 0
      %p271 = por %p269, %p270
      %s272 = ssub.s32 %s28, %s35
      %p273 = scmp.eq.s32.totalorder %s272, 0
      %s275 = sadd.s32 %s274, 1
      %s276 = scalar_select %p273, %s274, %s275
      %p279 = pneg %p273
      %p280 = scmp.eq.s32.totalorder %s28, 1
      %p281 = por %p279, %p280
      %p282 = scmp.ne.s32.totalorder %s274, %s277
      %p283 = scmp.eq.s32.totalorder %s28, 0
      %p284 = por %p282, %p283
      %p285 = scmp.ne.s32.totalorder %s274, %s277
      %p286 = scmp.eq.s32.totalorder %s33, 1
      %p287 = por %p285, %p286
      %p288 = scmp.ne.s32.totalorder %s277, %s278
      %p289 = scmp.eq.s32.totalorder %s33, 0
      %p290 = por %p288, %p289
      %p291 = scmp.ne.s32.totalorder %s277, %s278
      %p292 = scmp.eq.s32.totalorder %s34, 1
      %p293 = por %p291, %p292
      %p295 = scmp.ne.s32.totalorder %s278, %s294
      %p296 = scmp.eq.s32.totalorder %s34, 0
      %p297 = por %p295, %p296
      %s298 = ssub.s32 %s28, %s35
      %p299 = scmp.eq.s32.totalorder %s298, 0
      %s301 = sadd.s32 %s300, 1
      %s302 = scalar_select %p299, %s300, %s301
      %p305 = pneg %p299
      %p306 = scmp.eq.s32.totalorder %s28, 1
      %p307 = por %p305, %p306
      %p308 = scmp.ne.s32.totalorder %s300, %s303
      %p309 = scmp.eq.s32.totalorder %s28, 0
      %p310 = por %p308, %p309
      %p311 = scmp.ne.s32.totalorder %s300, %s303
      %p312 = scmp.eq.s32.totalorder %s33, 1
      %p313 = por %p311, %p312
      %p314 = scmp.ne.s32.totalorder %s303, %s304
      %p315 = scmp.eq.s32.totalorder %s33, 0
      %p316 = por %p314, %p315
      %p317 = scmp.ne.s32.totalorder %s303, %s304
      %p318 = scmp.eq.s32.totalorder %s34, 1
      %p319 = por %p317, %p318
      %p321 = scmp.ne.s32.totalorder %s304, %s320
      %p322 = scmp.eq.s32.totalorder %s34, 0
      %p323 = por %p321, %p322
      %s324 = ssub.s32 %s28, %s35
      %p325 = scmp.eq.s32.totalorder %s324, 0
      %s327 = sadd.s32 %s326, 1
      %s328 = scalar_select %p325, %s326, %s327
      %p331 = pneg %p325
      %p332 = scmp.eq.s32.totalorder %s28, 1
      %p333 = por %p331, %p332
      %p334 = scmp.ne.s32.totalorder %s326, %s329
      %p335 = scmp.eq.s32.totalorder %s28, 0
      %p336 = por %p334, %p335
      %p337 = scmp.ne.s32.totalorder %s326, %s329
      %p338 = scmp.eq.s32.totalorder %s33, 1
      %p339 = por %p337, %p338
      %p340 = scmp.ne.s32.totalorder %s329, %s330
      %p341 = scmp.eq.s32.totalorder %s33, 0
      %p342 = por %p340, %p341
      %p343 = scmp.ne.s32.totalorder %s329, %s330
      %p344 = scmp.eq.s32.totalorder %s34, 1
      %p345 = por %p343, %p344
      %p347 = scmp.ne.s32.totalorder %s330, %s346
      %p348 = scmp.eq.s32.totalorder %s34, 0
      %p349 = por %p347, %p348
      %p350 = scmp.le.s32.totalorder 1, %s28
      %p351 = scmp.lt.s32.totalorder %s28, 3
      %p352 = pnand %p350, %p351
      %p353 = pneg %p352
      // Predicated region
      $region9: #{tpu_custom_call.1} parent=5 // pred_check
        _
      $region10: #{tpu_custom_call.1} parent=5 // pred_check_branch
        %355 = sbr.rel (%p352) target = $region12
      $region11: #{tpu_custom_call.1} parent=5 // pred_region
        %s356 = ssub.s32 %s28, 1
        // Predicated region
        $region13: #{tpu_custom_call.1} parent=11 // pred_check
          %p357 = pneg %p75
        $region14: #{tpu_custom_call.1} parent=11 // pred_check_branch
          %359 = sbr.rel (%p357) target = $region16
        $region15: #{tpu_custom_call.1} parent=11 // pred_region
          _
        $region16: #{tpu_custom_call.1} parent=11 // pred_fallthru
          _
        // Predicated region
        $region17: #{tpu_custom_call.1} parent=11 // pred_check
          %p360 = pneg %p96
        $region18: #{tpu_custom_call.1} parent=11 // pred_check_branch
          %362 = sbr.rel (%p360) target = $region20
        $region19: #{tpu_custom_call.1} parent=11 // pred_region
          _
        $region20: #{tpu_custom_call.1} parent=11 // pred_fallthru
          _
        // Predicated region
        $region21: #{tpu_custom_call.1} parent=11 // pred_check
          %p363 = pneg %p117
        $region22: #{tpu_custom_call.1} parent=11 // pred_check_branch
          %365 = sbr.rel (%p363) target = $region24
        $region23: #{tpu_custom_call.1} parent=11 // pred_region
          _
        $region24: #{tpu_custom_call.1} parent=11 // pred_fallthru
          _
        // Predicated region
        $region25: #{tpu_custom_call.1} parent=11 // pred_check
          %p366 = pneg %p138
        $region26: #{tpu_custom_call.1} parent=11 // pred_check_branch
          %368 = sbr.rel (%p366) target = $region28
        $region27: #{tpu_custom_call.1} parent=11 // pred_region
          _
        $region28: #{tpu_custom_call.1} parent=11 // pred_fallthru
          _
        // Predicated region
        $region29: #{tpu_custom_call.1} parent=11 // pred_check
          %p369 = pneg %p159
        $region30: #{tpu_custom_call.1} parent=11 // pred_check_branch
          %371 = sbr.rel (%p369) target = $region32
        $region31: #{tpu_custom_call.1} parent=11 // pred_region
          _
        $region32: #{tpu_custom_call.1} parent=11 // pred_fallthru
          _
        // Predicated region
        $region33: #{tpu_custom_call.1} parent=11 // pred_check
          %p372 = pneg %p180
        $region34: #{tpu_custom_call.1} parent=11 // pred_check_branch
          %374 = sbr.rel (%p372) target = $region36
        $region35: #{tpu_custom_call.1} parent=11 // pred_region
          _
        $region36: #{tpu_custom_call.1} parent=11 // pred_fallthru
          _
        // Predicated region
        $region37: #{tpu_custom_call.1} parent=11 // pred_check
          %p375 = pneg %p201
        $region38: #{tpu_custom_call.1} parent=11 // pred_check_branch
          %377 = sbr.rel (%p375) target = $region40
        $region39: #{tpu_custom_call.1} parent=11 // pred_region
          _
        $region40: #{tpu_custom_call.1} parent=11 // pred_fallthru
          _
        // Predicated region
        $region41: #{tpu_custom_call.1} parent=11 // pred_check
          %p378 = pneg %p222
        $region42: #{tpu_custom_call.1} parent=11 // pred_check_branch
          %380 = sbr.rel (%p378) target = $region44
        $region43: #{tpu_custom_call.1} parent=11 // pred_region
          _
        $region44: #{tpu_custom_call.1} parent=11 // pred_fallthru
          _
        // Predicated region
        $region45: #{tpu_custom_call.1} parent=11 // pred_check
          %p381 = pneg %p243
        $region46: #{tpu_custom_call.1} parent=11 // pred_check_branch
          %383 = sbr.rel (%p381) target = $region48
        $region47: #{tpu_custom_call.1} parent=11 // pred_region
          _
        $region48: #{tpu_custom_call.1} parent=11 // pred_fallthru
          _
        // Predicated region
        $region49: #{tpu_custom_call.1} parent=11 // pred_check
          %p384 = pneg %p264
        $region50: #{tpu_custom_call.1} parent=11 // pred_check_branch
          %386 = sbr.rel (%p384) target = $region52
        $region51: #{tpu_custom_call.1} parent=11 // pred_region
          _
        $region52: #{tpu_custom_call.1} parent=11 // pred_fallthru
          _
      $region12: #{tpu_custom_call.1} parent=5 // pred_fallthru
        _
      %p387 = scmp.lt.s32.totalorder %s28, 2
      // Predicated region
      $region53: #{tpu_custom_call.1} parent=5 // pred_check
        %p388 = pneg %p387
      $region54: #{tpu_custom_call.1} parent=5 // pred_check_branch
        %390 = sbr.rel (%p388) target = $region56
      $region55: #{tpu_custom_call.1} parent=5 // pred_region
        // Predicated region
        $region57: #{tpu_custom_call.1} parent=55 // pred_check
          %p391 = pneg %p48
        $region58: #{tpu_custom_call.1} parent=55 // pred_check_branch
          %393 = sbr.rel (%p391) target = $region60
        $region59: #{tpu_custom_call.1} parent=55 // pred_region
          %p394 = scmp.lt.s32.totalorder %s28, 1
          %s395 = scalar_select %p394, %s28, 1
          %s396 = smul.addr %s395, 8
          %s397 = scalar_lea.vmem %s0, %s396
        $region60: #{tpu_custom_call.1} parent=55 // pred_fallthru
          _
      $region56: #{tpu_custom_call.1} parent=5 // pred_fallthru
        _
      %p398 = scmp.le.s32.totalorder 1, %s28
      %p399 = scmp.lt.s32.totalorder %s28, 3
      %p400 = pnand %p398, %p399
      %p401 = pneg %p400
      // Predicated region
      $region61: #{tpu_custom_call.1} parent=5 // pred_check
        _
      $region62: #{tpu_custom_call.1} parent=5 // pred_check_branch
        %403 = sbr.rel (%p400) target = $region64
      $region63: #{tpu_custom_call.1} parent=5 // pred_region
        %s404 = ssub.s32 %s28, 1
        %p405 = scmp.lt.s32.totalorder %s33, 1
        %s406 = scalar_select %p405, %s33, 1
        %s407 = smul.addr %s406, 8
        %s408 = scalar_lea.vmem %s0, %s407
        %p409 = pneg %p54
        %p410 = pneg %p51
        %p411 = pneg %p75
        %p412 = pneg %p72
        %p413 = pneg %p96
        %p414 = pneg %p93
        %p415 = pneg %p117
        %p416 = pneg %p114
        %p417 = pneg %p138
        %p418 = pneg %p135
        %p419 = pneg %p159
        %p420 = pneg %p156
        %p421 = pneg %p180
        %p422 = pneg %p177
        %p423 = pneg %p201
        %p424 = pneg %p198
        %p425 = pneg %p222
        %p426 = pneg %p219
        %p427 = pneg %p243
        %p428 = pneg %p240
        %p429 = pneg %p264
        %p430 = pneg %p261
        %p431 = pneg %p290
        %p432 = pneg %p287
        %s433 = sand.u32 %s277, 1
        %s434 = scalar_lea.sflag [#allocation4], %s433
        %s435 = sand.u32 %s277, 1
        %s436 = scalar_lea.vmem [#allocation3], %s435
        %p437 = pneg %p316
        %p438 = pneg %p313
        %s439 = sand.u32 %s33, 1
        %s440 = scalar_lea.sflag [#allocation6], %s439
        %s441 = sand.u32 %s303, 1
        %s442 = scalar_lea.vmem [#allocation5], %s441
        %p443 = pneg %p342
        %p444 = pneg %p339
        %s445 = sand.u32 %s33, 1
        %s446 = scalar_lea.sflag [#allocation6], %s445
        %s447 = sand.u32 %s329, 1
        %s448 = scalar_lea.vmem [#allocation7], %s447
        %p449 = scmp.lt.s32.totalorder %s33, 1
        %s450 = scalar_select %p449, %s33, 1
        %s451 = smul.addr %s450, 8
        %s452 = scalar_lea.vmem %s0, %s451
        %v454 = vld [vmem:[%s452] sm:$0xff]
        %v456 = vrot.slane %v454, 7
        %vm458 = vcmask 1040384
        %v459 = vsel %vm458, 0.0, %v456
        %v460 = vsel %vm458, %v456, 0.0
        %v461 = vpack.c.bf16 %v459, %v459
        %v462 = vpack.c.bf16 %v460, %v459
        %v463 = vld [vmem:[%s1] sm:$0xf]
        %v464 = vld [vmem:[%s1 + $0x4] sm:$0xf]
        %v465 = vld [vmem:[%s1 + $0x8] sm:$0xf]
        %v466 = vld [vmem:[%s1 + $0xc] sm:$0xf]
        %v467 = vld [vmem:[%s1 + $0x10] sm:$0xf]
        %v468 = vld [vmem:[%s1 + $0x14] sm:$0xf]
        %v469 = vld [vmem:[%s1 + $0x18] sm:$0xf]
        %v470 = vld [vmem:[%s1 + $0x1c] sm:$0xf]
        %v471 = vld [vmem:[%s1 + $0x20] sm:$0xf]
        %v472 = vld [vmem:[%s1 + $0x24] sm:$0xf]
        %v473 = vld [vmem:[%s1 + $0x28] sm:$0xf]
        %v474 = vld [vmem:[%s1 + $0x2c] sm:$0xf]
        %v476 = vshrl.u32 %v462, 16
        %v478 = vshll.u32 %v462, 16
        %v480 = vrot.slane %v478, 1
        %v481 = vor.u32 %v476, %v480
        %482 = vrot.lane.b32.xlu0 %v481, 32
        %v483 = vpop.permute.xlu0 %482
        %v485 = vrot.slane %v462, 1
        %486 = vrot.lane.b32.xlu0 %v485, 64
        %v487 = vpop.permute.xlu0 %486
        %vm488 = vcmask 261120
        %v491 = vsel %vm488, %v461, %v483
        %vm492 = vcmask 523264
        %v494 = vsel %vm492, %v491, %v487
        %v495 = vld [vmem:[%s2] sm:$0x1]
        %v497 = vlaneseq
        %v498 = vshrl.u32 %v497, 7
        %v499 = vsub.s32 0, %v498
        %v500 = vrot.slane %v495, %v499
        %v514 = vunpack.c.l.b16 %v463
        %v515 = vunpack.c.l.b16 %v464
        %v516 = vunpack.c.l.b16 %v465
        %v517 = vunpack.c.l.b16 %v466
        %v518 = vunpack.c.l.b16 %v467
        %v519 = vunpack.c.l.b16 %v468
        %v520 = vunpack.c.l.b16 %v469
        %v521 = vunpack.c.l.b16 %v470
        %v522 = vunpack.c.l.b16 %v471
        %v523 = vunpack.c.l.b16 %v472
        %v524 = vunpack.c.l.b16 %v473
        %v525 = vunpack.c.l.b16 %v474
        %v526 = vpack.c.b16 %v515, %v514
        %v527 = vpack.c.b16 %v517, %v516
        %v528 = vpack.c.b16 %v519, %v518
        %v529 = vpack.c.b16 %v521, %v520
        %v530 = vpack.c.b16 %v523, %v522
        %v531 = vpack.c.b16 %v525, %v524
        %vm538 = vcmask 785408
        %v539 = vsel %vm538, %v494, 0
        %541 = vmatprep.subr.bf16.mxu0 0
        %542 = vmatpush1.bf16.msra.mxu0 0
        %543 = vmatprep.subr.bf16.mxu0 0
        %544 = vmatpush1.bf16.msra.mxu0 0
        %545 = vmatprep.subr.bf16.mxu0 0
        %546 = vmatpush1.bf16.msra.mxu0 %v531
        %547 = vmatprep.subr.bf16.mxu0 0
        %548 = vmatpush1.bf16.msra.mxu0 %v530
        %549 = vmatprep.subr.bf16.mxu0 0
        %550 = vmatpush1.bf16.msra.mxu0 %v529
        %551 = vmatprep.subr.bf16.mxu0 0
        %552 = vmatpush1.bf16.msra.mxu0 %v528
        %553 = vmatprep.subr.bf16.mxu0 0
        %554 = vmatpush1.bf16.msra.mxu0 %v527
        %555 = vmatprep.subr.bf16.mxu0 0
        %556 = vmatpush1.bf16.msra.mxu0 %v526
        %557 = vmatprep.subr.bf16.mxu0 0
        %558 = vmatpush2.bf16.msra.mxu0 0
        %559 = vmatprep.subr.bf16.mxu0 0
        %560 = vmatpush2.bf16.msra.mxu0 0
        %561 = vmatprep.subr.bf16.mxu0 0
        %562 = vmatpush2.bf16.msra.mxu0 0
        %563 = vmatprep.subr.bf16.mxu0 0
        %564 = vmatpush2.bf16.msra.mxu0 0
        %565 = vmatprep.subr.bf16.mxu0 0
        %566 = vmatpush2.bf16.msra.mxu0 0
        %567 = vmatprep.subr.bf16.mxu0 0
        %568 = vmatpush2.bf16.msra.mxu0 0
        %569 = vmatprep.subr.bf16.mxu0 0
        %570 = vmatpush2.bf16.msra.mxu0 0
        %571 = vmatprep.subr.bf16.mxu0 0
        %572 = vmatpush2.bf16.msra.mxu0 0
        %573 = vmatprep.mubr.bf16.mxu0 0
        %574 = vmatmul.mubr.bf16.gmra.mxu0 %v539
        %v575 = vpop.f32.mrf.mxu0
        %v576 = vadd.f32 %v500, %v575
        %v577 = vpop.f32.mrf.mxu0
        %v578 = vpop.f32.mrf.mxu0
        %v579 = vpop.f32.mrf.mxu0
        %580 = vdwg.mxu0
        %v581 = vmax.f32 %v576, 0.0
        %v582 = vsel %vm488, %v581, 0.0
        %583 = vadd.xlane.f32.xlu0 %v582
        %v584 = vpop.xlane.xlu0 %583
        %v585 = vrcp.pop 32.0
        %v586 = vmul.f32 %v584, %v585
        %v587 = vsub.f32 %v581, %v586
        %v588 = vmul.f32 %v587, %v587
        %v589 = vsel %vm488, %v588, 0.0
        %590 = vadd.xlane.f32.xlu0 %v589
        %v591 = vpop.xlane.xlu0 %590
        %v592 = vmul.f32 %v591, %v585
        %v593 = vadd.f32 %v592, 1e-05
        %v594 = vrsqrt.pop %v593
        %v595 = vmul.f32 %v587, %v594
        %v596 = vld [vmem:[%s3] sm:$0x1]
        %v598 = vlaneseq
        %v599 = vshrl.u32 %v598, 7
        %v600 = vsub.s32 0, %v599
        %v601 = vrot.slane %v596, %v600
        %v603 = vmul.f32 %v595, %v601
        %v604 = vld [vmem:[%s4] sm:$0x1]
        %v606 = vlaneseq
        %v607 = vshrl.u32 %v606, 7
        %v608 = vsub.s32 0, %v607
        %v609 = vrot.slane %v604, %v608
        %v611 = vadd.f32 %v603, %v609
        %v613 = vrot.slane %v611, 7
        %v615 = vsel %vm458, 0.0, %v613
        %v616 = vsel %vm458, %v613, 0.0
        %v617 = vpack.c.bf16 %v615, %v615
        %v618 = vpack.c.bf16 %v616, %v615
        %v619 = vld [vmem:[%s5] sm:$0xf]
        %v620 = vld [vmem:[%s5 + $0x4] sm:$0xf]
        %v621 = vld [vmem:[%s5 + $0x8] sm:$0xf]
        %v622 = vld [vmem:[%s5 + $0xc] sm:$0xf]
        %v623 = vld [vmem:[%s5 + $0x10] sm:$0xf]
        %v624 = vld [vmem:[%s5 + $0x14] sm:$0xf]
        %v625 = vld [vmem:[%s5 + $0x18] sm:$0xf]
        %v626 = vld [vmem:[%s5 + $0x1c] sm:$0xf]
        %v627 = vld [vmem:[%s5 + $0x20] sm:$0xf]
        %v628 = vld [vmem:[%s5 + $0x24] sm:$0xf]
        %v629 = vld [vmem:[%s5 + $0x28] sm:$0xf]
        %v630 = vld [vmem:[%s5 + $0x2c] sm:$0xf]
        %v632 = vshrl.u32 %v618, 16
        %v634 = vshll.u32 %v618, 16
        %v636 = vrot.slane %v634, 1
        %v637 = vor.u32 %v632, %v636
        %638 = vrot.lane.b32.xlu0 %v637, 32
        %v639 = vpop.permute.xlu0 %638
        %v641 = vrot.slane %v618, 1
        %642 = vrot.lane.b32.xlu0 %v641, 64
        %v643 = vpop.permute.xlu0 %642
        %v646 = vsel %vm488, %v617, %v639
        %v648 = vsel %vm492, %v646, %v643
        %v649 = vld [vmem:[%s6] sm:$0x1]
        %v651 = vlaneseq
        %v652 = vshrl.u32 %v651, 7
        %v653 = vsub.s32 0, %v652
        %v654 = vrot.slane %v649, %v653
        %v668 = vunpack.c.l.b16 %v619
        %v669 = vunpack.c.l.b16 %v620
        %v670 = vunpack.c.l.b16 %v621
        %v671 = vunpack.c.l.b16 %v622
        %v672 = vunpack.c.l.b16 %v623
        %v673 = vunpack.c.l.b16 %v624
        %v674 = vunpack.c.l.b16 %v625
        %v675 = vunpack.c.l.b16 %v626
        %v676 = vunpack.c.l.b16 %v627
        %v677 = vunpack.c.l.b16 %v628
        %v678 = vunpack.c.l.b16 %v629
        %v679 = vunpack.c.l.b16 %v630
        %v680 = vpack.c.b16 %v669, %v668
        %v681 = vpack.c.b16 %v671, %v670
        %v682 = vpack.c.b16 %v673, %v672
        %v683 = vpack.c.b16 %v675, %v674
        %v684 = vpack.c.b16 %v677, %v676
        %v685 = vpack.c.b16 %v679, %v678
        %v692 = vsel %vm538, %v648, 0
        %694 = vmatprep.subr.bf16.mxu0 0
        %695 = vmatpush1.bf16.msra.mxu0 0
        %696 = vmatprep.subr.bf16.mxu0 0
        %697 = vmatpush1.bf16.msra.mxu0 0
        %698 = vmatprep.subr.bf16.mxu0 0
        %699 = vmatpush1.bf16.msra.mxu0 %v685
        %700 = vmatprep.subr.bf16.mxu0 0
        %701 = vmatpush1.bf16.msra.mxu0 %v684
        %702 = vmatprep.subr.bf16.mxu0 0
        %703 = vmatpush1.bf16.msra.mxu0 %v683
        %704 = vmatprep.subr.bf16.mxu0 0
        %705 = vmatpush1.bf16.msra.mxu0 %v682
        %706 = vmatprep.subr.bf16.mxu0 0
        %707 = vmatpush1.bf16.msra.mxu0 %v681
        %708 = vmatprep.subr.bf16.mxu0 0
        %709 = vmatpush1.bf16.msra.mxu0 %v680
        %710 = vmatprep.subr.bf16.mxu0 0
        %711 = vmatpush2.bf16.msra.mxu0 0
        %712 = vmatprep.subr.bf16.mxu0 0
        %713 = vmatpush2.bf16.msra.mxu0 0
        %714 = vmatprep.subr.bf16.mxu0 0
        %715 = vmatpush2.bf16.msra.mxu0 0
        %716 = vmatprep.subr.bf16.mxu0 0
        %717 = vmatpush2.bf16.msra.mxu0 0
        %718 = vmatprep.subr.bf16.mxu0 0
        %719 = vmatpush2.bf16.msra.mxu0 0
        %720 = vmatprep.subr.bf16.mxu0 0
        %721 = vmatpush2.bf16.msra.mxu0 0
        %722 = vmatprep.subr.bf16.mxu0 0
        %723 = vmatpush2.bf16.msra.mxu0 0
        %724 = vmatprep.subr.bf16.mxu0 0
        %725 = vmatpush2.bf16.msra.mxu0 0
        %726 = vmatprep.mubr.bf16.mxu0 0
        %727 = vmatmul.mubr.bf16.gmra.mxu0 %v692
        %v728 = vpop.f32.mrf.mxu0
        %v729 = vadd.f32 %v654, %v728
        %v730 = vpop.f32.mrf.mxu0
        %v731 = vpop.f32.mrf.mxu0
        %v732 = vpop.f32.mrf.mxu0
        %733 = vdwg.mxu0
        %v734 = vmax.f32 %v729, 0.0
        %v735 = vsel %vm488, %v734, 0.0
        %736 = vadd.xlane.f32.xlu0 %v735
        %v737 = vpop.xlane.xlu0 %736
        %v738 = vmul.f32 %v737, %v585
        %v739 = vsub.f32 %v734, %v738
        %v740 = vmul.f32 %v739, %v739
        %v741 = vsel %vm488, %v740, 0.0
        %742 = vadd.xlane.f32.xlu0 %v741
        %v743 = vpop.xlane.xlu0 %742
        %v744 = vmul.f32 %v743, %v585
        %v745 = vadd.f32 %v744, 1e-05
        %v746 = vrsqrt.pop %v745
        %v747 = vmul.f32 %v739, %v746
        %v748 = vld [vmem:[%s7] sm:$0x1]
        %v750 = vlaneseq
        %v751 = vshrl.u32 %v750, 7
        %v752 = vsub.s32 0, %v751
        %v753 = vrot.slane %v748, %v752
        %v755 = vmul.f32 %v747, %v753
        %v756 = vld [vmem:[%s8] sm:$0x1]
        %v758 = vlaneseq
        %v759 = vshrl.u32 %v758, 7
        %v760 = vsub.s32 0, %v759
        %v761 = vrot.slane %v756, %v760
        %v763 = vadd.f32 %v755, %v761
        %v764 = vld [vmem:[%s9] sm:$0x1]
        %v765 = vld [vmem:[#allocation2] sm:$0x1]
        %767 = vset.pattern.permute.xlu0 0
        %768 = vperm.xlu0 %767, %v765
        %v769 = vpop.permute.xlu0 %768
        %v771 = vlaneseq
        %v772 = vshrl.u32 %v771, 7
        %v773 = vsub.s32 0, %v772
        %v774 = vrot.slane %v769, %v773
        %v776 = vsel %vm488, %v764, 0
        %v779 = vsel %vm488, %v763, 0
        %781 = vmatprep.subr.mxu0 0.0
        %782 = vmatpush1.xpose.msra.mxu0 0.0
        %783 = vmatprep.subr.mxu0 0.0
        %784 = vmatpush1.xpose.msra.mxu0 0.0
        %785 = vmatprep.subr.mxu0 0.0
        %786 = vmatpush1.xpose.msra.mxu0 0.0
        %787 = vmatprep.subr.mxu0 0.0
        %788 = vmatpush1.xpose.msra.mxu0 0.0
        %789 = vmatprep.subr.mxu0 0.0
        %790 = vmatpush1.xpose.msra.mxu0 0.0
        %791 = vmatprep.subr.mxu0 0.0
        %792 = vmatpush1.xpose.msra.mxu0 0.0
        %793 = vmatprep.subr.mxu0 0.0
        %794 = vmatpush1.xpose.msra.mxu0 0.0
        %795 = vmatprep.subr.mxu0 0.0
        %796 = vmatpush1.xpose.msra.mxu0 0.0
        %797 = vmatprep.subr.mxu0 0.0
        %798 = vmatpush1.xpose.msra.mxu0 0.0
        %799 = vmatprep.subr.mxu0 0.0
        %800 = vmatpush1.xpose.msra.mxu0 0.0
        %801 = vmatprep.subr.mxu0 0.0
        %802 = vmatpush1.xpose.msra.mxu0 0.0
        %803 = vmatprep.subr.mxu0 0.0
        %804 = vmatpush1.xpose.msra.mxu0 0.0
        %805 = vmatprep.subr.mxu0 0.0
        %806 = vmatpush1.xpose.msra.mxu0 0.0
        %807 = vmatprep.subr.mxu0 0.0
        %808 = vmatpush1.xpose.msra.mxu0 0.0
        %809 = vmatprep.subr.mxu0 0.0
        %810 = vmatpush1.xpose.msra.mxu0 0.0
        %811 = vmatprep.subr.mxu0 0.0
        %812 = vmatpush1.xpose.msra.mxu0 %v779
        %813 = vmatprep.subr.mxu0 0.0
        %814 = vmatpush2.xpose.msra.mxu0 0.0
        %815 = vmatprep.subr.mxu0 0.0
        %816 = vmatpush2.xpose.msra.mxu0 0.0
        %817 = vmatprep.subr.mxu0 0.0
        %818 = vmatpush2.xpose.msra.mxu0 0.0
        %819 = vmatprep.subr.mxu0 0.0
        %820 = vmatpush2.xpose.msra.mxu0 0.0
        %821 = vmatprep.subr.mxu0 0.0
        %822 = vmatpush2.xpose.msra.mxu0 0.0
        %823 = vmatprep.subr.mxu0 0.0
        %824 = vmatpush2.xpose.msra.mxu0 0.0
        %825 = vmatprep.subr.mxu0 0.0
        %826 = vmatpush2.xpose.msra.mxu0 0.0
        %827 = vmatprep.subr.mxu0 0.0
        %828 = vmatpush2.xpose.msra.mxu0 0.0
        %829 = vmatprep.subr.mxu0 0.0
        %830 = vmatpush2.xpose.msra.mxu0 0.0
        %831 = vmatprep.subr.mxu0 0.0
        %832 = vmatpush2.xpose.msra.mxu0 0.0
        %833 = vmatprep.subr.mxu0 0.0
        %834 = vmatpush2.xpose.msra.mxu0 0.0
        %835 = vmatprep.subr.mxu0 0.0
        %836 = vmatpush2.xpose.msra.mxu0 0.0
        %837 = vmatprep.subr.mxu0 0.0
        %838 = vmatpush2.xpose.msra.mxu0 0.0
        %839 = vmatprep.subr.mxu0 0.0
        %840 = vmatpush2.xpose.msra.mxu0 0.0
        %841 = vmatprep.subr.mxu0 0.0
        %842 = vmatpush2.xpose.msra.mxu0 0.0
        %843 = vmatprep.subr.mxu0 0.0
        %844 = vmatpush2.xpose.msra.mxu0 0.0
        %845 = vmatprep.mubr.f32.mxu0 0.0
        %846 = vmatmul.mubr.f32.gmra.mxu0 %v776
        %v847 = vpop.f32.mrf.mxu0
        %v848 = vadd.f32 %v774, %v847
        %v849 = vpop.f32.mrf.mxu0
        %850 = vdwg.mxu0
        %vm851 = vcmask 57344
        %852 = vst.msk [vmem:[%s436] sm:$0x1] %vm851, %v848
        %v853 = vmul.f32 %v848, 1.442695
        %v854 = vpow.pop %v853
        %v855 = vsub.f32 %v854, 1.0
        %v856 = vround.ne.pseudo %v855
        %v857 = vmax.f32 %v856, 0.0
        %v858 = vcvt.f32.s32.to.zero.pseudo %v857
        %859 = vst.msk [vmem:[%s442] sm:$0x1] %vm851, %v858
        %860 = vrot.lane.b32.xlu0 %v858, 1
        %v861 = vpop.permute.xlu0 %860
        %vm862 = vcmask 7168
        %v863 = vsel %vm862, 0, %v861
        %v864 = vadd.s32 %v858, %v863
        %865 = vrot.lane.b32.xlu0 %v864, 2
        %v866 = vpop.permute.xlu0 %865
        %vm867 = vcmask 15360
        %v868 = vsel %vm867, 0, %v866
        %v869 = vadd.s32 %v864, %v868
        %870 = vrot.lane.b32.xlu0 %v869, 4
        %v871 = vpop.permute.xlu0 %870
        %vm872 = vcmask 31744
        %v873 = vsel %vm872, 0, %v871
        %v874 = vadd.s32 %v869, %v873
        %875 = vst.msk [vmem:[%s448] sm:$0x1] %vm851, %v874
        %s876 = sand.u32 %s277, 1
        %s877 = scalar_lea.sflag [#allocation4], %s876
        %s878 = sand.u32 %s277, 1
        %s879 = scalar_lea.vmem [#allocation3], %s878
        %s880 = sand.u32 %s33, 1
        %s881 = scalar_lea.sflag [#allocation6], %s880
        %s882 = sand.u32 %s303, 1
        %s883 = scalar_lea.vmem [#allocation5], %s882
        %s884 = sand.u32 %s33, 1
        %s885 = scalar_lea.sflag [#allocation6], %s884
        %s886 = sand.u32 %s329, 1
        %s887 = scalar_lea.vmem [#allocation7], %s886
        // Predicated region
        $region65: #{tpu_custom_call.1} parent=63 // pred_check
          %p888 = pneg %p287
        $region66: #{tpu_custom_call.1} parent=63 // pred_check_branch
          %890 = sbr.rel (%p888) target = $region68
        $region67: #{tpu_custom_call.1} parent=63 // pred_region
          %s892 = ssub.s32 16, 16
          %893 = vsyncadd %s877, %s892
          %s894 = smul.addr %s33, 16
          %s895 = scalar_lea.hbm %s11, %s894
          %s897 = sshll.u32 %s879, 4
          %s898 = int_to_ptr.vmem [resolvable:$true] %s897
          %900 = dma.vmem_to_hbm [thread:$0]  %s898, 16, %s895, %s877
        $region68: #{tpu_custom_call.1} parent=63 // pred_fallthru
          _
        // Predicated region
        $region69: #{tpu_custom_call.1} parent=63 // pred_check
          %p901 = pneg %p313
        $region70: #{tpu_custom_call.1} parent=63 // pred_check_branch
          %903 = sbr.rel (%p901) target = $region72
        $region71: #{tpu_custom_call.1} parent=63 // pred_region
          %s905 = ssub.s32 16, 16
          %906 = vsyncadd %s881, %s905
          %s907 = smul.addr %s33, 16
          %s908 = scalar_lea.hbm %s12, %s907
          %s910 = sshll.u32 %s883, 4
          %s911 = int_to_ptr.vmem [resolvable:$true] %s910
          %913 = dma.vmem_to_hbm [thread:$0]  %s911, 16, %s908, %s881
        $region72: #{tpu_custom_call.1} parent=63 // pred_fallthru
          _
        // Predicated region
        $region73: #{tpu_custom_call.1} parent=63 // pred_check
          %p914 = pneg %p339
        $region74: #{tpu_custom_call.1} parent=63 // pred_check_branch
          %916 = sbr.rel (%p914) target = $region76
        $region75: #{tpu_custom_call.1} parent=63 // pred_region
          %s918 = ssub.s32 16, 16
          %919 = vsyncadd %s885, %s918
          %s920 = smul.addr %s33, 16
          %s921 = scalar_lea.hbm %s13, %s920
          %s923 = sshll.u32 %s887, 4
          %s924 = int_to_ptr.vmem [resolvable:$true] %s923
          %926 = dma.vmem_to_hbm [thread:$0]  %s924, 16, %s921, %s885
        $region76: #{tpu_custom_call.1} parent=63 // pred_fallthru
          _
      $region64: #{tpu_custom_call.1} parent=5 // pred_fallthru
        _
      %p927 = scmp.le.s32.totalorder 2, %s28
      // Predicated region
      $region77: #{tpu_custom_call.1} parent=5 // pred_check
        %p928 = pneg %p927
      $region78: #{tpu_custom_call.1} parent=5 // pred_check_branch
        %930 = sbr.rel (%p928) target = $region80
      $region79: #{tpu_custom_call.1} parent=5 // pred_region
        %s931 = ssub.s32 %s28, 2
        // Predicated region
        $region81: #{tpu_custom_call.1} parent=79 // pred_check
          %p932 = pneg %p293
        $region82: #{tpu_custom_call.1} parent=79 // pred_check_branch
          %934 = sbr.rel (%p932) target = $region84
        $region83: #{tpu_custom_call.1} parent=79 // pred_region
          %s935 = sand.u32 %s278, 1
          %s936 = scalar_lea.sflag [#allocation4], %s935
          %s937 = sand.u32 %s278, 1
          %s938 = scalar_lea.vmem [#allocation3], %s937
          %939 = dma.done %s936, 16
        $region84: #{tpu_custom_call.1} parent=79 // pred_fallthru
          _
        // Predicated region
        $region85: #{tpu_custom_call.1} parent=79 // pred_check
          %p940 = pneg %p319
        $region86: #{tpu_custom_call.1} parent=79 // pred_check_branch
          %942 = sbr.rel (%p940) target = $region88
        $region87: #{tpu_custom_call.1} parent=79 // pred_region
          %s943 = sand.u32 %s34, 1
          %s944 = scalar_lea.sflag [#allocation6], %s943
          %s945 = sand.u32 %s304, 1
          %s946 = scalar_lea.vmem [#allocation5], %s945
          %947 = dma.done %s944, 16
        $region88: #{tpu_custom_call.1} parent=79 // pred_fallthru
          _
        // Predicated region
        $region89: #{tpu_custom_call.1} parent=79 // pred_check
          %p948 = pneg %p345
        $region90: #{tpu_custom_call.1} parent=79 // pred_check_branch
          %950 = sbr.rel (%p948) target = $region92
        $region91: #{tpu_custom_call.1} parent=79 // pred_region
          %s951 = sand.u32 %s34, 1
          %s952 = scalar_lea.sflag [#allocation6], %s951
          %s953 = sand.u32 %s330, 1
          %s954 = scalar_lea.vmem [#allocation7], %s953
          %955 = dma.done %s952, 16
        $region92: #{tpu_custom_call.1} parent=79 // pred_fallthru
          _
      $region80: #{tpu_custom_call.1} parent=5 // pred_fallthru
        _
    $region6: #{tpu_custom_call.1} parent=1 // loop_footer
      %s32 = sadd.s32 1, %s28
    $region7: #{tpu_custom_call.1} parent=1 // loop_footer_branch
      %27 = sbr.rel target = $region3
    $region8: #{tpu_custom_call.1} parent=1 // loop_exit
      _
    %956 = vsyncpa [#allocation4], 1
    %s957 = scalar_lea.sflag [#allocation4], 1
    %958 = vsyncpa %s957, 1
    %959 = vsyncpa [#allocation6], 1
    %s960 = scalar_lea.sflag [#allocation6], 1
    %961 = vsyncpa %s960, 1

</llo_original>
